<compile_context>
chip_gen: v7x
topology: tpu7x:2x2x1
jax: 0.10.0
libtpu: 0.0.40
codegen_flags: <defaults>
</compile_context>

<pallas_src>
import functools

import numpy as np

import jax
import jax.numpy as jnp
from jax import lax
from jax.experimental import pallas as pl
from jax.experimental.pallas import tpu as pltpu


FIELDS = ("dayofweek", "time", "sex", "age", "month", "day")
NUM_FIELDS = len(FIELDS)


def _round_up(x, m):
    return ((x + m - 1) // m) * m


def _create_userid_kernel(row_offsets,
                          dow_ref, time_ref, sex_ref, age_ref, month_ref,
                          day_ref, tab_ref, out_ref):
    """Fused lookup: multi-hot (TB, Vtot) @ block-diagonal table (Vtot, 6*D).

    row_offsets are compile-time Python ints (cumulative vocab offsets), so the
    per-field shift is folded into a cheap scalar-broadcast add in-kernel.
    Field row-blocks are disjoint -> OR of the 6 one-hots is the exact
    selection matrix, and each output element is a single 1.0*value product
    with f32 accumulation (bit-exact vs. the gather reference).
    """
    idx_refs = (dow_ref, time_ref, sex_ref, age_ref, month_ref, day_ref)
    tb = out_ref.shape[0]
    vtot = tab_ref.shape[0]

    # Lane iota over the fused vocabulary axis (>=2D iota required on TPU).
    iota = lax.broadcasted_iota(jnp.int32, (tb, vtot), 1)

    # Boolean multi-hot: 6 compares OR'd, single cast at the end (VPU-lean).
    hot = None
    for ref, off in zip(idx_refs, row_offsets):
        eq = iota == (ref[...] + off)          # (tb,1) broadcast vs (tb,vtot)
        hot = eq if hot is None else (hot | eq)

    # Single MXU pass -> lane-contiguous (TB, 6*D) output, one store.
    # TODO(synk): if a downstream 48->N projection / wider concat consumer
    # exists in the full model, fuse it here so the stored last dim is >=128
    # lanes (removes the masked-store epilogue + one HBM round trip).
    out_ref[...] = jnp.dot(
        hot.astype(jnp.float32), tab_ref[...],
        preferred_element_type=jnp.float32
    ).astype(out_ref.dtype)


def pack_tables(tables):
    """Build the fused block-diagonal table ONCE per weight update.

    tables: dict field -> (V_field, D) float32.
    Returns (fused_tab (Vtot, 6*D) f32, vocab sizes tuple).
    """
    vocab = tuple(int(tables[k].shape[0]) for k in FIELDS)
    fused_tab = jax.scipy.linalg.block_diag(
        *[tables[k].astype(jnp.float32) for k in FIELDS]
    )                                                       # (Vtot, 6*D)
    return fused_tab, vocab


def create_userid_forward(dayofweek, time, sex, age, month, day,
                          fused_tab, vocab, *, block_b=2048):
    """Forward pass: 6 embedding lookups + concat -> (B, 6*D) float32.

    fused_tab / vocab come from pack_tables() (hoisted out of the hot path).
    Indices are assumed in-range per field (torch.nn.Embedding would raise;
    here an out-of-range index silently selects a neighboring field's block).
    """
    assert block_b % 8 == 0, "batch tile must be a multiple of 8"
    vtot, out_w = int(fused_tab.shape[0]), int(fused_tab.shape[1])
    assert vtot == sum(vocab)
    row_offsets = tuple(
        int(x) for x in np.concatenate([[0], np.cumsum(vocab[:-1])]))

    # Pass raw per-field indices as (B, 1) columns (reshape only; no extra
    # stack/offset/pad HBM pass in the wrapper).
    idx_cols = tuple(jnp.asarray(x, jnp.int32).reshape(-1, 1)
                     for x in (dayofweek, time, sex, age, month, day))
    B = int(idx_cols[0].shape[0])

    # Batch tiling: large tiles amortize per-grid-step overhead; cap so the
    # 1-D "parallel" grid has >=2 steps whenever B allows, so v7x megacore can
    # shard across its 2 TensorCores. VMEM at tb=2048 is ~2-3 MiB (out tiles
    # 2x384 KiB, idx tiles, ~1 MiB implicit one-hot, 16 KiB resident table) --
    # comfortably under every generation's default scoped-VMEM limit.
    if B <= 8:
        tb = B
    else:
        tb = min(block_b, _round_up(pl.cdiv(B, 2), 8))
    grid = (pl.cdiv(B, tb),)

    idx_spec = pl.BlockSpec((tb, 1), lambda i: (i, 0))
    kernel = functools.partial(_create_userid_kernel, row_offsets)

    out = pl.pallas_call(
        kernel,
        out_shape=jax.ShapeDtypeStruct((B, out_w), jnp.float32),
        grid=grid,
        in_specs=[idx_spec] * NUM_FIELDS + [
            pl.BlockSpec((vtot, out_w), lambda i: (0, 0)),   # resident table
        ],
        out_specs=pl.BlockSpec((tb, out_w), lambda i: (i, 0)),
        compiler_params=pltpu.CompilerParams(
            dimension_semantics=("parallel",)),
    )(*idx_cols, fused_tab)
    return out


def _make_tables(key, vocab_sizes, num_dim):
    """Deterministic N(0, 0.1) init, matching nn.init.normal_(std=0.1)."""
    tables = {}
    for name, V in vocab_sizes.items():
        key, sub = jax.random.split(key)
        tables[name] = 0.1 * jax.random.normal(sub, (V, num_dim), jnp.float32)
    return tables


if __name__ == "__main__":
    # GMF variant: num_dim = num_factor / 6
    num_factor = 48
    num_dim = num_factor // 6          # 8
    vocab_sizes = {
        "dayofweek": 7,
        "time": 24,
        "sex": 2,
        "age": 8,
        "month": 12,
        "day": 31,
    }
    B = 32

    key = jax.random.PRNGKey(0)
    tables = _make_tables(key, vocab_sizes, num_dim)

    key, *iks = jax.random.split(key, 7)
    idx = {}
    for k, ik in zip(FIELDS, iks):
        idx[k] = jax.random.randint(ik, (B,), 0, vocab_sizes[k], jnp.int32)

    # Table packing hoisted out of the forward path (once per weight update).
    fused_tab, vocab = pack_tables(tables)

    # B=32 with the >=2-step rule -> tb=16, grid=(2,), exercising the tiled
    # / megacore-shardable path.
    out = create_userid_forward(idx["dayofweek"], idx["time"], idx["sex"],
                                idx["age"], idx["month"], idx["day"],
                                fused_tab, vocab)
    out = jax.block_until_ready(out)

    # Pure-JAX reference (torch.nn.Embedding + cat semantics).
    ref = jnp.concatenate(
        [jnp.take(tables[k], idx[k], axis=0) for k in FIELDS], axis=-1)
    assert out.shape == (B, 6 * num_dim), out.shape
    assert jnp.allclose(out, ref, atol=1e-6), "mismatch vs reference"

    print("KERNEL_OK")
</pallas_src>

<mosaic_0001>
module attributes {stable_mosaic.version = 11 : i64} {
  func.func @_create_userid_kernel(%arg0: i32, %arg1: memref<16x1xi32, #tpu.memory_space<vmem>>, %arg2: memref<16x1xi32, #tpu.memory_space<vmem>>, %arg3: memref<16x1xi32, #tpu.memory_space<vmem>>, %arg4: memref<16x1xi32, #tpu.memory_space<vmem>>, %arg5: memref<16x1xi32, #tpu.memory_space<vmem>>, %arg6: memref<16x1xi32, #tpu.memory_space<vmem>>, %arg7: memref<84x48xf32, #tpu.memory_space<vmem>>, %arg8: memref<16x48xf32, #tpu.memory_space<vmem>>) attributes {dimension_semantics = [#tpu.dimension_semantics<parallel>], iteration_bounds = array<i64: 2>, scalar_prefetch = 0 : i64, scratch_operands = 0 : i64, tpu.core_type = #tpu.core_type<tc>, window_params = [{transform_indices = @transform_0, window_bounds = array<i64: 16, 1>}, {transform_indices = @transform_1, window_bounds = array<i64: 16, 1>}, {transform_indices = @transform_2, window_bounds = array<i64: 16, 1>}, {transform_indices = @transform_3, window_bounds = array<i64: 16, 1>}, {transform_indices = @transform_4, window_bounds = array<i64: 16, 1>}, {transform_indices = @transform_5, window_bounds = array<i64: 16, 1>}, {pipeline_mode = #tpu.pipeline_mode<synchronous>, transform_indices = @transform_6, window_bounds = array<i64: 84, 48>}, {transform_indices = @transform_7, window_bounds = array<i64: 16, 48>}]} {
    %0 = tpu.iota {dimensions = array<i32: 1>} : vector<16x84xi32>
    %c0 = arith.constant 0 : index
    %c0_0 = arith.constant 0 : index
    %1 = vector.load %arg1[%c0, %c0_0] : memref<16x1xi32, #tpu.memory_space<vmem>>, vector<16x1xi32>
    %c0_i32 = arith.constant 0 : i32
    %2 = vector.broadcast %c0_i32 : i32 to vector<16x1xi32>
    %3 = arith.addi %1, %2 : vector<16x1xi32>
    %4 = vector.broadcast %3 : vector<16x1xi32> to vector<16x84xi32>
    %5 = arith.cmpi eq, %0, %4 : vector<16x84xi32>
    %c0_1 = arith.constant 0 : index
    %c0_2 = arith.constant 0 : index
    %6 = vector.load %arg2[%c0_1, %c0_2] : memref<16x1xi32, #tpu.memory_space<vmem>>, vector<16x1xi32>
    %c7_i32 = arith.constant 7 : i32
    %7 = vector.broadcast %c7_i32 : i32 to vector<16x1xi32>
    %8 = arith.addi %6, %7 : vector<16x1xi32>
    %9 = vector.broadcast %8 : vector<16x1xi32> to vector<16x84xi32>
    %10 = arith.cmpi eq, %0, %9 : vector<16x84xi32>
    %11 = arith.ori %5, %10 : vector<16x84xi1>
    %c0_3 = arith.constant 0 : index
    %c0_4 = arith.constant 0 : index
    %12 = vector.load %arg3[%c0_3, %c0_4] : memref<16x1xi32, #tpu.memory_space<vmem>>, vector<16x1xi32>
    %c31_i32 = arith.constant 31 : i32
    %13 = vector.broadcast %c31_i32 : i32 to vector<16x1xi32>
    %14 = arith.addi %12, %13 : vector<16x1xi32>
    %15 = vector.broadcast %14 : vector<16x1xi32> to vector<16x84xi32>
    %16 = arith.cmpi eq, %0, %15 : vector<16x84xi32>
    %17 = arith.ori %11, %16 : vector<16x84xi1>
    %c0_5 = arith.constant 0 : index
    %c0_6 = arith.constant 0 : index
    %18 = vector.load %arg4[%c0_5, %c0_6] : memref<16x1xi32, #tpu.memory_space<vmem>>, vector<16x1xi32>
    %c33_i32 = arith.constant 33 : i32
    %19 = vector.broadcast %c33_i32 : i32 to vector<16x1xi32>
    %20 = arith.addi %18, %19 : vector<16x1xi32>
    %21 = vector.broadcast %20 : vector<16x1xi32> to vector<16x84xi32>
    %22 = arith.cmpi eq, %0, %21 : vector<16x84xi32>
    %23 = arith.ori %17, %22 : vector<16x84xi1>
    %c0_7 = arith.constant 0 : index
    %c0_8 = arith.constant 0 : index
    %24 = vector.load %arg5[%c0_7, %c0_8] : memref<16x1xi32, #tpu.memory_space<vmem>>, vector<16x1xi32>
    %c41_i32 = arith.constant 41 : i32
    %25 = vector.broadcast %c41_i32 : i32 to vector<16x1xi32>
    %26 = arith.addi %24, %25 : vector<16x1xi32>
    %27 = vector.broadcast %26 : vector<16x1xi32> to vector<16x84xi32>
    %28 = arith.cmpi eq, %0, %27 : vector<16x84xi32>
    %29 = arith.ori %23, %28 : vector<16x84xi1>
    %c0_9 = arith.constant 0 : index
    %c0_10 = arith.constant 0 : index
    %30 = vector.load %arg6[%c0_9, %c0_10] : memref<16x1xi32, #tpu.memory_space<vmem>>, vector<16x1xi32>
    %c53_i32 = arith.constant 53 : i32
    %31 = vector.broadcast %c53_i32 : i32 to vector<16x1xi32>
    %32 = arith.addi %30, %31 : vector<16x1xi32>
    %33 = vector.broadcast %32 : vector<16x1xi32> to vector<16x84xi32>
    %34 = arith.cmpi eq, %0, %33 : vector<16x84xi32>
    %35 = arith.ori %29, %34 : vector<16x84xi1>
    %36 = arith.extui %35 : vector<16x84xi1> to vector<16x84xi32>
    %37 = arith.sitofp %36 : vector<16x84xi32> to vector<16x84xf32>
    %c0_11 = arith.constant 0 : index
    %c0_12 = arith.constant 0 : index
    %38 = vector.load %arg7[%c0_11, %c0_12] : memref<84x48xf32, #tpu.memory_space<vmem>>, vector<84x48xf32>
    %cst = arith.constant dense<0.000000e+00> : vector<16x48xf32>
    %39 = tpu.matmul %37, %38, %cst {dimension_numbers = #tpu.dot_dimension_numbers<[1], [0], [0], [1], [0, 0, 1, 1], [], []>} : vector<16x84xf32>, vector<84x48xf32>, vector<16x48xf32> -> vector<16x48xf32>
    %c0_13 = arith.constant 0 : index
    %c0_14 = arith.constant 0 : index
    %40 = vector.load %arg8[%c0_13, %c0_14] : memref<16x48xf32, #tpu.memory_space<vmem>>, vector<16x48xf32>
    tpu.vector_store %arg8[%c0_13, %c0_14], %39 {strides = array<i32>} : memref<16x48xf32, #tpu.memory_space<vmem>>, vector<16x48xf32>,
    return
  }
  func.func @transform_0(%arg0: i32) -> (i32, i32) {
    %c0_i32 = arith.constant 0 : i32
    %c0_i32_0 = arith.constant 0 : i32
    return %arg0, %c0_i32 : i32, i32
  }
  func.func @transform_1(%arg0: i32) -> (i32, i32) {
    %c0_i32 = arith.constant 0 : i32
    %c0_i32_0 = arith.constant 0 : i32
    return %arg0, %c0_i32 : i32, i32
  }
  func.func @transform_2(%arg0: i32) -> (i32, i32) {
    %c0_i32 = arith.constant 0 : i32
    %c0_i32_0 = arith.constant 0 : i32
    return %arg0, %c0_i32 : i32, i32
  }
  func.func @transform_3(%arg0: i32) -> (i32, i32) {
    %c0_i32 = arith.constant 0 : i32
    %c0_i32_0 = arith.constant 0 : i32
    return %arg0, %c0_i32 : i32, i32
  }
  func.func @transform_4(%arg0: i32) -> (i32, i32) {
    %c0_i32 = arith.constant 0 : i32
    %c0_i32_0 = arith.constant 0 : i32
    return %arg0, %c0_i32 : i32, i32
  }
  func.func @transform_5(%arg0: i32) -> (i32, i32) {
    %c0_i32 = arith.constant 0 : i32
    %c0_i32_0 = arith.constant 0 : i32
    return %arg0, %c0_i32 : i32, i32
  }
  func.func @transform_6(%arg0: i32) -> (i32, i32) {
    %c0_i32 = arith.constant 0 : i32
    %c0_i32_0 = arith.constant 0 : i32
    %c0_i32_1 = arith.constant 0 : i32
    return %c0_i32, %c0_i32_0 : i32, i32
  }
  func.func @transform_7(%arg0: i32) -> (i32, i32) {
    %c0_i32 = arith.constant 0 : i32
    %c0_i32_0 = arith.constant 0 : i32
    return %arg0, %c0_i32 : i32, i32
  }
}

</mosaic_0001>

<llo_original>
// kernel: tpu_custom_call.1
$region0: #{tpu_custom_call.1}
  #allocation0 [shape = 'u32[]', space=smem, size = 0x4, offset = 0x4, fixed_abs, tag = 'smem constant byte address 0x4 - core index']
  #allocation1 [shape = 'u32[144,128]{1,0:T(1,128)}', space=vmem, size = 0x12000, scoped, tag = 'internal scratch']
  %s0 = inlined_call_operand.vmem [shape: s32[32,1], index: 0, kind: input, shape index: {}]
  %s1 = inlined_call_operand.vmem [shape: s32[32,1], index: 1, kind: input, shape index: {}]
  %s2 = inlined_call_operand.vmem [shape: s32[32,1], index: 2, kind: input, shape index: {}]
  %s3 = inlined_call_operand.vmem [shape: s32[32,1], index: 3, kind: input, shape index: {}]
  %s4 = inlined_call_operand.vmem [shape: s32[32,1], index: 4, kind: input, shape index: {}]
  %s5 = inlined_call_operand.vmem [shape: s32[32,1], index: 5, kind: input, shape index: {}]
  %s6 = inlined_call_operand.vmem [shape: f32[84,48], index: 6, kind: input, shape index: {}]
  %s7 = inlined_call_operand.hbm [shape: f32[32,48], index: 7, kind: output, shape index: {}]
  %s8 = sld [smem:[#allocation0]]
  $region61: #{tpu_custom_call.1} parent=0
    _
  %s10 = ssub.s32 1, %s8
  %s11 = scalar_select 0, %s10, %s8
  $region1: #{tpu_custom_call.1} parent=0
    #allocation2 [shape = 'u8[16384]{0}', space=vmem, size = 0x4000, scoped, tag = 'output window, operand 0']
    #allocation3 [shape = 's32[2]{0}', space=sflag, size = 0x8, scoped, tag = 'scoped memory for tpu_custom_call.1']
    %12 = vsyncpa [#allocation3], 0
    %s13 = scalar_lea.sflag [#allocation3], 1
    %14 = vsyncpa %s13, 0
    loop: start=0, step=1, limit=4
    $region2: #{tpu_custom_call.1} parent=1 // loop_pre_header
      _
    $region3: #{tpu_custom_call.1} parent=1 // loop_header
      %s16 = sphi 0, %s20
      %p17 = scmp.ge.s32.totalorder %s16, 4
      %s26 = sphi 0, %s28
      %s29 = sphi 0, %s26
      %s30 = sphi 0, %s29
      %s46 = sphi 0, %s30
      %s52 = sphi 0, %s54
      %s55 = sphi 0, %s52
      %s56 = sphi 0, %s55
      %s72 = sphi 0, %s56
      %s78 = sphi 0, %s80
      %s81 = sphi 0, %s78
      %s82 = sphi 0, %s81
      %s98 = sphi 0, %s82
      %s104 = sphi 0, %s106
      %s107 = sphi 0, %s104
      %s108 = sphi 0, %s107
      %s124 = sphi 0, %s108
      %s130 = sphi 0, %s132
      %s133 = sphi 0, %s130
      %s134 = sphi 0, %s133
      %s150 = sphi 0, %s134
      %s156 = sphi 0, %s158
      %s159 = sphi 0, %s156
      %s160 = sphi 0, %s159
      %s176 = sphi 0, %s160
      %s180 = sphi 0, %s180
      %s182 = sphi 0, %s180
      %s183 = sphi 0, %s182
      %s197 = sphi 0, %s183
      %s203 = sphi 0, %s205
      %s206 = sphi 0, %s203
      %s207 = sphi 0, %s206
      %s223 = sphi 0, %s207
    $region4: #{tpu_custom_call.1} parent=1 // loop_header_branch
      %19 = sbr.rel (%p17) target = $region8
    $region5: #{tpu_custom_call.1} parent=1 // loop_body
      %s21 = ssub.s32 %s16, 1
      %s22 = ssub.s32 %s16, 2
      %s23 = sadd.s32 %s16, 1
      %s24 = ssub.s32 %s16, %s23
      %p25 = scmp.eq.s32.totalorder %s24, 0
      %s27 = sadd.s32 %s26, 1
      %s28 = scalar_select %p25, %s26, %s27
      %p31 = pneg %p25
      %p32 = scmp.eq.s32.totalorder %s16, 1
      %p33 = por %p31, %p32
      %p34 = scmp.ne.s32.totalorder %s26, %s29
      %p35 = scmp.eq.s32.totalorder %s16, 0
      %p36 = por %p34, %p35
      %p37 = scmp.ne.s32.totalorder %s26, %s29
      %p38 = scmp.eq.s32.totalorder %s21, 1
      %p39 = por %p37, %p38
      %p40 = scmp.ne.s32.totalorder %s29, %s30
      %p41 = scmp.eq.s32.totalorder %s21, 0
      %p42 = por %p40, %p41
      %p43 = scmp.ne.s32.totalorder %s29, %s30
      %p44 = scmp.eq.s32.totalorder %s22, 1
      %p45 = por %p43, %p44
      %p47 = scmp.ne.s32.totalorder %s30, %s46
      %p48 = scmp.eq.s32.totalorder %s22, 0
      %p49 = por %p47, %p48
      %s50 = ssub.s32 %s16, %s23
      %p51 = scmp.eq.s32.totalorder %s50, 0
      %s53 = sadd.s32 %s52, 1
      %s54 = scalar_select %p51, %s52, %s53
      %p57 = pneg %p51
      %p58 = scmp.eq.s32.totalorder %s16, 1
      %p59 = por %p57, %p58
      %p60 = scmp.ne.s32.totalorder %s52, %s55
      %p61 = scmp.eq.s32.totalorder %s16, 0
      %p62 = por %p60, %p61
      %p63 = scmp.ne.s32.totalorder %s52, %s55
      %p64 = scmp.eq.s32.totalorder %s21, 1
      %p65 = por %p63, %p64
      %p66 = scmp.ne.s32.totalorder %s55, %s56
      %p67 = scmp.eq.s32.totalorder %s21, 0
      %p68 = por %p66, %p67
      %p69 = scmp.ne.s32.totalorder %s55, %s56
      %p70 = scmp.eq.s32.totalorder %s22, 1
      %p71 = por %p69, %p70
      %p73 = scmp.ne.s32.totalorder %s56, %s72
      %p74 = scmp.eq.s32.totalorder %s22, 0
      %p75 = por %p73, %p74
      %s76 = ssub.s32 %s16, %s23
      %p77 = scmp.eq.s32.totalorder %s76, 0
      %s79 = sadd.s32 %s78, 1
      %s80 = scalar_select %p77, %s78, %s79
      %p83 = pneg %p77
      %p84 = scmp.eq.s32.totalorder %s16, 1
      %p85 = por %p83, %p84
      %p86 = scmp.ne.s32.totalorder %s78, %s81
      %p87 = scmp.eq.s32.totalorder %s16, 0
      %p88 = por %p86, %p87
      %p89 = scmp.ne.s32.totalorder %s78, %s81
      %p90 = scmp.eq.s32.totalorder %s21, 1
      %p91 = por %p89, %p90
      %p92 = scmp.ne.s32.totalorder %s81, %s82
      %p93 = scmp.eq.s32.totalorder %s21, 0
      %p94 = por %p92, %p93
      %p95 = scmp.ne.s32.totalorder %s81, %s82
      %p96 = scmp.eq.s32.totalorder %s22, 1
      %p97 = por %p95, %p96
      %p99 = scmp.ne.s32.totalorder %s82, %s98
      %p100 = scmp.eq.s32.totalorder %s22, 0
      %p101 = por %p99, %p100
      %s102 = ssub.s32 %s16, %s23
      %p103 = scmp.eq.s32.totalorder %s102, 0
      %s105 = sadd.s32 %s104, 1
      %s106 = scalar_select %p103, %s104, %s105
      %p109 = pneg %p103
      %p110 = scmp.eq.s32.totalorder %s16, 1
      %p111 = por %p109, %p110
      %p112 = scmp.ne.s32.totalorder %s104, %s107
      %p113 = scmp.eq.s32.totalorder %s16, 0
      %p114 = por %p112, %p113
      %p115 = scmp.ne.s32.totalorder %s104, %s107
      %p116 = scmp.eq.s32.totalorder %s21, 1
      %p117 = por %p115, %p116
      %p118 = scmp.ne.s32.totalorder %s107, %s108
      %p119 = scmp.eq.s32.totalorder %s21, 0
      %p120 = por %p118, %p119
      %p121 = scmp.ne.s32.totalorder %s107, %s108
      %p122 = scmp.eq.s32.totalorder %s22, 1
      %p123 = por %p121, %p122
      %p125 = scmp.ne.s32.totalorder %s108, %s124
      %p126 = scmp.eq.s32.totalorder %s22, 0
      %p127 = por %p125, %p126
      %s128 = ssub.s32 %s16, %s23
      %p129 = scmp.eq.s32.totalorder %s128, 0
      %s131 = sadd.s32 %s130, 1
      %s132 = scalar_select %p129, %s130, %s131
      %p135 = pneg %p129
      %p136 = scmp.eq.s32.totalorder %s16, 1
      %p137 = por %p135, %p136
      %p138 = scmp.ne.s32.totalorder %s130, %s133
      %p139 = scmp.eq.s32.totalorder %s16, 0
      %p140 = por %p138, %p139
      %p141 = scmp.ne.s32.totalorder %s130, %s133
      %p142 = scmp.eq.s32.totalorder %s21, 1
      %p143 = por %p141, %p142
      %p144 = scmp.ne.s32.totalorder %s133, %s134
      %p145 = scmp.eq.s32.totalorder %s21, 0
      %p146 = por %p144, %p145
      %p147 = scmp.ne.s32.totalorder %s133, %s134
      %p148 = scmp.eq.s32.totalorder %s22, 1
      %p149 = por %p147, %p148
      %p151 = scmp.ne.s32.totalorder %s134, %s150
      %p152 = scmp.eq.s32.totalorder %s22, 0
      %p153 = por %p151, %p152
      %s154 = ssub.s32 %s16, %s23
      %p155 = scmp.eq.s32.totalorder %s154, 0
      %s157 = sadd.s32 %s156, 1
      %s158 = scalar_select %p155, %s156, %s157
      %p161 = pneg %p155
      %p162 = scmp.eq.s32.totalorder %s16, 1
      %p163 = por %p161, %p162
      %p164 = scmp.ne.s32.totalorder %s156, %s159
      %p165 = scmp.eq.s32.totalorder %s16, 0
      %p166 = por %p164, %p165
      %p167 = scmp.ne.s32.totalorder %s156, %s159
      %p168 = scmp.eq.s32.totalorder %s21, 1
      %p169 = por %p167, %p168
      %p170 = scmp.ne.s32.totalorder %s159, %s160
      %p171 = scmp.eq.s32.totalorder %s21, 0
      %p172 = por %p170, %p171
      %p173 = scmp.ne.s32.totalorder %s159, %s160
      %p174 = scmp.eq.s32.totalorder %s22, 1
      %p175 = por %p173, %p174
      %p177 = scmp.ne.s32.totalorder %s160, %s176
      %p178 = scmp.eq.s32.totalorder %s22, 0
      %p179 = por %p177, %p178
      %s181 = sadd.s32 %s180, 1
      %p184 = scmp.eq.s32.totalorder %s16, 1
      %p185 = scmp.ne.s32.totalorder %s180, %s182
      %p186 = scmp.eq.s32.totalorder %s16, 0
      %p187 = por %p185, %p186
      %p188 = scmp.ne.s32.totalorder %s180, %s182
      %p189 = scmp.eq.s32.totalorder %s21, 1
      %p190 = por %p188, %p189
      %p191 = scmp.ne.s32.totalorder %s182, %s183
      %p192 = scmp.eq.s32.totalorder %s21, 0
      %p193 = por %p191, %p192
      %p194 = scmp.ne.s32.totalorder %s182, %s183
      %p195 = scmp.eq.s32.totalorder %s22, 1
      %p196 = por %p194, %p195
      %p198 = scmp.ne.s32.totalorder %s183, %s197
      %p199 = scmp.eq.s32.totalorder %s22, 0
      %p200 = por %p198, %p199
      %s201 = ssub.s32 %s16, %s23
      %p202 = scmp.eq.s32.totalorder %s201, 0
      %s204 = sadd.s32 %s203, 1
      %s205 = scalar_select %p202, %s203, %s204
      %p208 = pneg %p202
      %p209 = scmp.eq.s32.totalorder %s16, 1
      %p210 = por %p208, %p209
      %p211 = scmp.ne.s32.totalorder %s203, %s206
      %p212 = scmp.eq.s32.totalorder %s16, 0
      %p213 = por %p211, %p212
      %p214 = scmp.ne.s32.totalorder %s203, %s206
      %p215 = scmp.eq.s32.totalorder %s21, 1
      %p216 = por %p214, %p215
      %p217 = scmp.ne.s32.totalorder %s206, %s207
      %p218 = scmp.eq.s32.totalorder %s21, 0
      %p219 = por %p217, %p218
      %p220 = scmp.ne.s32.totalorder %s206, %s207
      %p221 = scmp.eq.s32.totalorder %s22, 1
      %p222 = por %p220, %p221
      %p224 = scmp.ne.s32.totalorder %s207, %s223
      %p225 = scmp.eq.s32.totalorder %s22, 0
      %p226 = por %p224, %p225
      %p227 = scmp.le.s32.totalorder 1, %s16
      %p228 = scmp.lt.s32.totalorder %s16, 3
      %p229 = pnand %p227, %p228
      %p230 = pneg %p229
      // Predicated region
      $region9: #{tpu_custom_call.1} parent=5 // pred_check
        _
      $region10: #{tpu_custom_call.1} parent=5 // pred_check_branch
        %232 = sbr.rel (%p229) target = $region12
      $region11: #{tpu_custom_call.1} parent=5 // pred_region
        %s233 = ssub.s32 %s16, 1
        // Predicated region
        $region13: #{tpu_custom_call.1} parent=11 // pred_check
          %p234 = pneg %p193
        $region14: #{tpu_custom_call.1} parent=11 // pred_check_branch
          %236 = sbr.rel (%p234) target = $region16
        $region15: #{tpu_custom_call.1} parent=11 // pred_region
          _
        $region16: #{tpu_custom_call.1} parent=11 // pred_fallthru
          _
      $region12: #{tpu_custom_call.1} parent=5 // pred_fallthru
        _
      %p237 = scmp.lt.s32.totalorder %s16, 2
      // Predicated region
      $region17: #{tpu_custom_call.1} parent=5 // pred_check
        %p238 = pneg %p237
      $region18: #{tpu_custom_call.1} parent=5 // pred_check_branch
        %240 = sbr.rel (%p238) target = $region20
      $region19: #{tpu_custom_call.1} parent=5 // pred_region
        // Predicated region
        $region21: #{tpu_custom_call.1} parent=19 // pred_check
          %p241 = pneg %p36
        $region22: #{tpu_custom_call.1} parent=19 // pred_check_branch
          %243 = sbr.rel (%p241) target = $region24
        $region23: #{tpu_custom_call.1} parent=19 // pred_region
          %s244 = smul.u32 2, %s16
          %p245 = scmp.lt.s32.totalorder %s244, 3
          %s246 = scalar_select %p245, %s244, 3
          %s247 = smul.addr %s246, 8
          %s248 = scalar_lea.vmem %s0, %s247
          %s249 = smul.u32 2, %s16
        $region24: #{tpu_custom_call.1} parent=19 // pred_fallthru
          _
        // Predicated region
        $region25: #{tpu_custom_call.1} parent=19 // pred_check
          %p250 = pneg %p62
        $region26: #{tpu_custom_call.1} parent=19 // pred_check_branch
          %252 = sbr.rel (%p250) target = $region28
        $region27: #{tpu_custom_call.1} parent=19 // pred_region
          %s253 = smul.u32 2, %s16
          %p254 = scmp.lt.s32.totalorder %s253, 3
          %s255 = scalar_select %p254, %s253, 3
          %s256 = smul.addr %s255, 8
          %s257 = scalar_lea.vmem %s1, %s256
          %s258 = smul.u32 2, %s16
        $region28: #{tpu_custom_call.1} parent=19 // pred_fallthru
          _
        // Predicated region
        $region29: #{tpu_custom_call.1} parent=19 // pred_check
          %p259 = pneg %p88
        $region30: #{tpu_custom_call.1} parent=19 // pred_check_branch
          %261 = sbr.rel (%p259) target = $region32
        $region31: #{tpu_custom_call.1} parent=19 // pred_region
          %s262 = smul.u32 2, %s16
          %p263 = scmp.lt.s32.totalorder %s262, 3
          %s264 = scalar_select %p263, %s262, 3
          %s265 = smul.addr %s264, 8
          %s266 = scalar_lea.vmem %s2, %s265
          %s267 = smul.u32 2, %s16
        $region32: #{tpu_custom_call.1} parent=19 // pred_fallthru
          _
        // Predicated region
        $region33: #{tpu_custom_call.1} parent=19 // pred_check
          %p268 = pneg %p114
        $region34: #{tpu_custom_call.1} parent=19 // pred_check_branch
          %270 = sbr.rel (%p268) target = $region36
        $region35: #{tpu_custom_call.1} parent=19 // pred_region
          %s271 = smul.u32 2, %s16
          %p272 = scmp.lt.s32.totalorder %s271, 3
          %s273 = scalar_select %p272, %s271, 3
          %s274 = smul.addr %s273, 8
          %s275 = scalar_lea.vmem %s3, %s274
          %s276 = smul.u32 2, %s16
        $region36: #{tpu_custom_call.1} parent=19 // pred_fallthru
          _
        // Predicated region
        $region37: #{tpu_custom_call.1} parent=19 // pred_check
          %p277 = pneg %p140
        $region38: #{tpu_custom_call.1} parent=19 // pred_check_branch
          %279 = sbr.rel (%p277) target = $region40
        $region39: #{tpu_custom_call.1} parent=19 // pred_region
          %s280 = smul.u32 2, %s16
          %p281 = scmp.lt.s32.totalorder %s280, 3
          %s282 = scalar_select %p281, %s280, 3
          %s283 = smul.addr %s282, 8
          %s284 = scalar_lea.vmem %s4, %s283
          %s285 = smul.u32 2, %s16
        $region40: #{tpu_custom_call.1} parent=19 // pred_fallthru
          _
        // Predicated region
        $region41: #{tpu_custom_call.1} parent=19 // pred_check
          %p286 = pneg %p166
        $region42: #{tpu_custom_call.1} parent=19 // pred_check_branch
          %288 = sbr.rel (%p286) target = $region44
        $region43: #{tpu_custom_call.1} parent=19 // pred_region
          %s289 = smul.u32 2, %s16
          %p290 = scmp.lt.s32.totalorder %s289, 3
          %s291 = scalar_select %p290, %s289, 3
          %s292 = smul.addr %s291, 8
          %s293 = scalar_lea.vmem %s5, %s292
          %s294 = smul.u32 2, %s16
        $region44: #{tpu_custom_call.1} parent=19 // pred_fallthru
          _
      $region20: #{tpu_custom_call.1} parent=5 // pred_fallthru
        _
      %p295 = scmp.le.s32.totalorder 1, %s16
      %p296 = scmp.lt.s32.totalorder %s16, 3
      %p297 = pnand %p295, %p296
      %p298 = pneg %p297
      // Predicated region
      $region45: #{tpu_custom_call.1} parent=5 // pred_check
        _
      $region46: #{tpu_custom_call.1} parent=5 // pred_check_branch
        %300 = sbr.rel (%p297) target = $region48
      $region47: #{tpu_custom_call.1} parent=5 // pred_region
        %s301 = ssub.s32 %s16, 1
        %s302 = smul.u32 2, %s21
        %p303 = scmp.lt.s32.totalorder %s302, 3
        %s304 = scalar_select %p303, %s302, 3
        %s305 = smul.addr %s304, 8
        %s306 = scalar_lea.vmem %s0, %s305
        %p307 = pneg %p42
        %p308 = pneg %p39
        %s309 = smul.u32 2, %s21
        %p310 = scmp.lt.s32.totalorder %s309, 3
        %s311 = scalar_select %p310, %s309, 3
        %s312 = smul.addr %s311, 8
        %s313 = scalar_lea.vmem %s1, %s312
        %p314 = pneg %p68
        %p315 = pneg %p65
        %s316 = smul.u32 2, %s21
        %p317 = scmp.lt.s32.totalorder %s316, 3
        %s318 = scalar_select %p317, %s316, 3
        %s319 = smul.addr %s318, 8
        %s320 = scalar_lea.vmem %s2, %s319
        %p321 = pneg %p94
        %p322 = pneg %p91
        %s323 = smul.u32 2, %s21
        %p324 = scmp.lt.s32.totalorder %s323, 3
        %s325 = scalar_select %p324, %s323, 3
        %s326 = smul.addr %s325, 8
        %s327 = scalar_lea.vmem %s3, %s326
        %p328 = pneg %p120
        %p329 = pneg %p117
        %s330 = smul.u32 2, %s21
        %p331 = scmp.lt.s32.totalorder %s330, 3
        %s332 = scalar_select %p331, %s330, 3
        %s333 = smul.addr %s332, 8
        %s334 = scalar_lea.vmem %s4, %s333
        %p335 = pneg %p146
        %p336 = pneg %p143
        %s337 = smul.u32 2, %s21
        %p338 = scmp.lt.s32.totalorder %s337, 3
        %s339 = scalar_select %p338, %s337, 3
        %s340 = smul.addr %s339, 8
        %s341 = scalar_lea.vmem %s5, %s340
        %p342 = pneg %p172
        %p343 = pneg %p169
        %p344 = pneg %p193
        %p345 = pneg %p190
        %p346 = pneg %p219
        %p347 = pneg %p216
        %s348 = sand.u32 %s206, 1
        %s349 = scalar_lea.sflag [#allocation3], %s348
        %s350 = sand.u32 %s206, 1
        %s351 = smul.addr %s350, 16
        %s352 = scalar_lea.vmem [#allocation2], %s351
        %s353 = smul.u32 2, %s21
        %p354 = scmp.lt.s32.totalorder %s353, 3
        %s355 = scalar_select %p354, %s353, 3
        %s356 = smul.addr %s355, 8
        %s357 = scalar_lea.vmem %s0, %s356
        %s358 = smul.u32 2, %s21
        %s359 = smul.u32 2, %s21
        %p360 = scmp.lt.s32.totalorder %s359, 3
        %s361 = scalar_select %p360, %s359, 3
        %s362 = smul.addr %s361, 8
        %s363 = scalar_lea.vmem %s1, %s362
        %s364 = smul.u32 2, %s21
        %s365 = smul.u32 2, %s21
        %p366 = scmp.lt.s32.totalorder %s365, 3
        %s367 = scalar_select %p366, %s365, 3
        %s368 = smul.addr %s367, 8
        %s369 = scalar_lea.vmem %s2, %s368
        %s370 = smul.u32 2, %s21
        %s371 = smul.u32 2, %s21
        %p372 = scmp.lt.s32.totalorder %s371, 3
        %s373 = scalar_select %p372, %s371, 3
        %s374 = smul.addr %s373, 8
        %s375 = scalar_lea.vmem %s3, %s374
        %s376 = smul.u32 2, %s21
        %s377 = smul.u32 2, %s21
        %p378 = scmp.lt.s32.totalorder %s377, 3
        %s379 = scalar_select %p378, %s377, 3
        %s380 = smul.addr %s379, 8
        %s381 = scalar_lea.vmem %s4, %s380
        %s382 = smul.u32 2, %s21
        %s383 = smul.u32 2, %s21
        %p384 = scmp.lt.s32.totalorder %s383, 3
        %s385 = scalar_select %p384, %s383, 3
        %s386 = smul.addr %s385, 8
        %s387 = scalar_lea.vmem %s5, %s386
        %s388 = smul.u32 2, %s21
        %s389 = smul.u32 2, %s21
        %v390 = vlaneseq
        %v391 = vand.u32 %v390, 127
        %v392 = vld [vmem:[%s357] sm:$0xff]
        %v393 = vld [vmem:[%s357 + $0x8] sm:$0xff]
        %394 = vset.pattern.permute.xlu0 0
        %395 = vperm.xlu0 %394, %v392
        %v396 = vpop.permute.xlu0 %395
        %397 = vset.pattern.permute.xlu0 0
        %398 = vperm.xlu0 %397, %v393
        %v399 = vpop.permute.xlu0 %398
        %vm400 = vcmp.eq.s32.totalorder %v391, %v396
        %vm401 = vcmp.eq.s32.totalorder %v391, %v399
        %v402 = vld [vmem:[%s363] sm:$0xff]
        %v403 = vld [vmem:[%s363 + $0x8] sm:$0xff]
        %v404 = vadd.s32 %v402, 7
        %v405 = vadd.s32 %v403, 7
        %406 = vset.pattern.permute.xlu0 0
        %407 = vperm.xlu0 %406, %v404
        %v408 = vpop.permute.xlu0 %407
        %409 = vset.pattern.permute.xlu0 0
        %410 = vperm.xlu0 %409, %v405
        %v411 = vpop.permute.xlu0 %410
        %vm412 = vcmp.eq.s32.totalorder %v391, %v408
        %vm413 = vcmp.eq.s32.totalorder %v391, %v411
        %vm414 = vmor %vm400, %vm412
        %vm415 = vmor %vm401, %vm413
        %v416 = vld [vmem:[%s369] sm:$0xff]
        %v417 = vld [vmem:[%s369 + $0x8] sm:$0xff]
        %v418 = vadd.s32 %v416, 31
        %v419 = vadd.s32 %v417, 31
        %420 = vset.pattern.permute.xlu0 0
        %421 = vperm.xlu0 %420, %v418
        %v422 = vpop.permute.xlu0 %421
        %423 = vset.pattern.permute.xlu0 0
        %424 = vperm.xlu0 %423, %v419
        %v425 = vpop.permute.xlu0 %424
        %vm426 = vcmp.eq.s32.totalorder %v391, %v422
        %vm427 = vcmp.eq.s32.totalorder %v391, %v425
        %vm428 = vmor %vm414, %vm426
        %vm429 = vmor %vm415, %vm427
        %v430 = vld [vmem:[%s375] sm:$0xff]
        %v431 = vld [vmem:[%s375 + $0x8] sm:$0xff]
        %v432 = vadd.s32 %v430, 33
        %v433 = vadd.s32 %v431, 33
        %434 = vset.pattern.permute.xlu0 0
        %435 = vperm.xlu0 %434, %v432
        %v436 = vpop.permute.xlu0 %435
        %437 = vset.pattern.permute.xlu0 0
        %438 = vperm.xlu0 %437, %v433
        %v439 = vpop.permute.xlu0 %438
        %vm440 = vcmp.eq.s32.totalorder %v391, %v436
        %vm441 = vcmp.eq.s32.totalorder %v391, %v439
        %vm442 = vmor %vm428, %vm440
        %vm443 = vmor %vm429, %vm441
        %v444 = vld [vmem:[%s381] sm:$0xff]
        %v445 = vld [vmem:[%s381 + $0x8] sm:$0xff]
        %v446 = vadd.s32 %v444, 41
        %v447 = vadd.s32 %v445, 41
        %448 = vset.pattern.permute.xlu0 0
        %449 = vperm.xlu0 %448, %v446
        %v450 = vpop.permute.xlu0 %449
        %451 = vset.pattern.permute.xlu0 0
        %452 = vperm.xlu0 %451, %v447
        %v453 = vpop.permute.xlu0 %452
        %vm454 = vcmp.eq.s32.totalorder %v391, %v450
        %vm455 = vcmp.eq.s32.totalorder %v391, %v453
        %vm456 = vmor %vm442, %vm454
        %vm457 = vmor %vm443, %vm455
        %v458 = vld [vmem:[%s387] sm:$0xff]
        %v459 = vld [vmem:[%s387 + $0x8] sm:$0xff]
        %v460 = vadd.s32 %v458, 53
        %v461 = vadd.s32 %v459, 53
        %462 = vset.pattern.permute.xlu0 0
        %463 = vperm.xlu0 %462, %v460
        %v464 = vpop.permute.xlu0 %463
        %465 = vset.pattern.permute.xlu0 0
        %466 = vperm.xlu0 %465, %v461
        %v467 = vpop.permute.xlu0 %466
        %vm468 = vcmp.eq.s32.totalorder %v391, %v464
        %vm469 = vcmp.eq.s32.totalorder %v391, %v467
        %vm470 = vmor %vm456, %vm468
        %vm471 = vmor %vm457, %vm469
        %v472 = vsel %vm470, 1, 0
        %v473 = vsel %vm471, 1, 0
        %v474 = vcvt.s32.f32 %v472
        %v475 = vcvt.s32.f32 %v473
        %v476 = vld [vmem:[%s6] sm:$0xff]
        %v477 = vld [vmem:[%s6 + $0x8] sm:$0xff]
        %v478 = vld [vmem:[%s6 + $0x10] sm:$0xff]
        %v479 = vld [vmem:[%s6 + $0x18] sm:$0xff]
        %v480 = vld [vmem:[%s6 + $0x20] sm:$0xff]
        %v481 = vld [vmem:[%s6 + $0x28] sm:$0xff]
        %v482 = vld [vmem:[%s6 + $0x30] sm:$0xff]
        %v483 = vld [vmem:[%s6 + $0x38] sm:$0xff]
        %v484 = vld [vmem:[%s6 + $0x40] sm:$0xff]
        %v485 = vld [vmem:[%s6 + $0x48] sm:$0xff]
        %v486 = vld [vmem:[%s6 + $0x50] sm:$0xf]
        %vm487 = vcmask 687104
        %v489 = vsel %vm487, %v474, 0
        %v492 = vsel %vm487, %v475, 0
        %vm494 = vcmask 1043456
        %v496 = vsel %vm494, %v486, 0
        %498 = vmatprep.subr.mxu0 0.0
        %499 = vmatpush1.msra.mxu0 %v476
        %500 = vmatprep.subr.mxu0 0.0
        %501 = vmatpush1.msra.mxu0 %v477
        %502 = vmatprep.subr.mxu0 0.0
        %503 = vmatpush1.msra.mxu0 %v478
        %504 = vmatprep.subr.mxu0 0.0
        %505 = vmatpush1.msra.mxu0 %v479
        %506 = vmatprep.subr.mxu0 0.0
        %507 = vmatpush1.msra.mxu0 %v480
        %508 = vmatprep.subr.mxu0 0.0
        %509 = vmatpush1.msra.mxu0 %v481
        %510 = vmatprep.subr.mxu0 0.0
        %511 = vmatpush1.msra.mxu0 %v482
        %512 = vmatprep.subr.mxu0 0.0
        %513 = vmatpush1.msra.mxu0 %v483
        %514 = vmatprep.subr.mxu0 0.0
        %515 = vmatpush1.msra.mxu0 %v484
        %516 = vmatprep.subr.mxu0 0.0
        %517 = vmatpush1.msra.mxu0 %v485
        %518 = vmatprep.subr.mxu0 0.0
        %519 = vmatpush1.msra.mxu0 %v496
        %520 = vmatprep.subr.mxu0 0.0
        %521 = vmatpush1.msra.mxu0 0.0
        %522 = vmatprep.subr.mxu0 0.0
        %523 = vmatpush1.msra.mxu0 0.0
        %524 = vmatprep.subr.mxu0 0.0
        %525 = vmatpush1.msra.mxu0 0.0
        %526 = vmatprep.subr.mxu0 0.0
        %527 = vmatpush1.msra.mxu0 0.0
        %528 = vmatprep.subr.mxu0 0.0
        %529 = vmatpush1.msra.mxu0 0.0
        %530 = vmatprep.subr.mxu0 0.0
        %531 = vmatpush1.msra.mxu0 0.0
        %532 = vmatprep.subr.mxu0 0.0
        %533 = vmatpush1.msra.mxu0 0.0
        %534 = vmatprep.subr.mxu0 0.0
        %535 = vmatpush1.msra.mxu0 0.0
        %536 = vmatprep.subr.mxu0 0.0
        %537 = vmatpush1.msra.mxu0 0.0
        %538 = vmatprep.subr.mxu0 0.0
        %539 = vmatpush1.msra.mxu0 0.0
        %540 = vmatprep.subr.mxu0 0.0
        %541 = vmatpush1.msra.mxu0 0.0
        %542 = vmatprep.subr.mxu0 0.0
        %543 = vmatpush1.msra.mxu0 0.0
        %544 = vmatprep.subr.mxu0 0.0
        %545 = vmatpush1.msra.mxu0 0.0
        %546 = vmatprep.subr.mxu0 0.0
        %547 = vmatpush1.msra.mxu0 0.0
        %548 = vmatprep.subr.mxu0 0.0
        %549 = vmatpush1.msra.mxu0 0.0
        %550 = vmatprep.subr.mxu0 0.0
        %551 = vmatpush1.msra.mxu0 0.0
        %552 = vmatprep.subr.mxu0 0.0
        %553 = vmatpush1.msra.mxu0 0.0
        %554 = vmatprep.subr.mxu0 0.0
        %555 = vmatpush1.msra.mxu0 0.0
        %556 = vmatprep.subr.mxu0 0.0
        %557 = vmatpush1.msra.mxu0 0.0
        %558 = vmatprep.subr.mxu0 0.0
        %559 = vmatpush1.msra.mxu0 0.0
        %560 = vmatprep.subr.mxu0 0.0
        %561 = vmatpush1.msra.mxu0 0.0
        %562 = vmatprep.mubr.f32.mxu0 0.0
        %563 = vmatmul.mubr.f32.gmra.mrb[0].mxu0 %v489
        %v564 = vpop.f32.mrb[0].mxu0
        %v565 = vadd.f32 0.0, %v564
        %v566 = vpop.f32.mrb[0].mxu0
        %567 = vmatprep.mubr.f32.mxu0 0.0
        %568 = vmatmul.mubr.f32.gmra.mrb[0].mxu0 %v492
        %v569 = vpop.f32.mrb[0].mxu0
        %v570 = vadd.f32 0.0, %v569
        %v571 = vpop.f32.mrb[0].mxu0
        %572 = vdwg.mxu0
        %vm573 = vcmask 392192
        %574 = vst.msk [vmem:[%s352] sm:$0xff] %vm573, %v565
        %575 = vst.msk [vmem:[%s352 + $0x8] sm:$0xff] %vm573, %v570
        %s576 = sand.u32 %s206, 1
        %s577 = scalar_lea.sflag [#allocation3], %s576
        %s578 = sand.u32 %s206, 1
        %s579 = smul.addr %s578, 16
        %s580 = scalar_lea.vmem [#allocation2], %s579
        // Predicated region
        $region49: #{tpu_custom_call.1} parent=47 // pred_check
          %p581 = pneg %p216
        $region50: #{tpu_custom_call.1} parent=47 // pred_check_branch
          %583 = sbr.rel (%p581) target = $region52
        $region51: #{tpu_custom_call.1} parent=47 // pred_region
          %s584 = smul.u32 2, %s21
          %s586 = ssub.s32 256, 256
          %587 = vsyncadd %s577, %s586
          %s588 = smul.addr %s584, 128
          %s589 = scalar_lea.hbm %s7, %s588
          %s590 = sshll.u32 %s580, 4
          %s591 = int_to_ptr.vmem [resolvable:$true] %s590
          %596 = dma.vmem_to_hbm [thread:$0]  %s591, 256, %s589, %s577, 128, 128, 8
        $region52: #{tpu_custom_call.1} parent=47 // pred_fallthru
          _
      $region48: #{tpu_custom_call.1} parent=5 // pred_fallthru
        _
      %p597 = scmp.le.s32.totalorder 2, %s16
      // Predicated region
      $region53: #{tpu_custom_call.1} parent=5 // pred_check
        %p598 = pneg %p597
      $region54: #{tpu_custom_call.1} parent=5 // pred_check_branch
        %600 = sbr.rel (%p598) target = $region56
      $region55: #{tpu_custom_call.1} parent=5 // pred_region
        %s601 = ssub.s32 %s16, 2
        // Predicated region
        $region57: #{tpu_custom_call.1} parent=55 // pred_check
          %p602 = pneg %p222
        $region58: #{tpu_custom_call.1} parent=55 // pred_check_branch
          %604 = sbr.rel (%p602) target = $region60
        $region59: #{tpu_custom_call.1} parent=55 // pred_region
          %s605 = sand.u32 %s207, 1
          %s606 = scalar_lea.sflag [#allocation3], %s605
          %s607 = sand.u32 %s207, 1
          %s608 = smul.addr %s607, 16
          %s609 = scalar_lea.vmem [#allocation2], %s608
          %610 = dma.done %s606, 256
        $region60: #{tpu_custom_call.1} parent=55 // pred_fallthru
          _
      $region56: #{tpu_custom_call.1} parent=5 // pred_fallthru
        _
    $region6: #{tpu_custom_call.1} parent=1 // loop_footer
      %s20 = sadd.s32 1, %s16
    $region7: #{tpu_custom_call.1} parent=1 // loop_footer_branch
      %15 = sbr.rel target = $region3
    $region8: #{tpu_custom_call.1} parent=1 // loop_exit
      _
    %611 = vsyncpa [#allocation3], 1
    %s612 = scalar_lea.sflag [#allocation3], 1
    %613 = vsyncpa %s612, 1

</llo_original>
